<compile_context>
chip_gen: v7x
topology: tpu7x:2x2x1
jax: 0.10.0
libtpu: 0.0.40
codegen_flags: <defaults>
</compile_context>

<pallas_src>
import functools

import numpy as np
import jax
import jax.numpy as jnp
from jax import lax
from jax.experimental import pallas as pl
from jax.experimental.pallas import tpu as pltpu

BN_EPS = 1e-5


def _relu6(x):
    return jnp.minimum(jnp.maximum(x, 0.0), 6.0)


# ---------------------------------------------------------------------------
# Pallas kernel: one image per grid step, processed in row-chunks with halo
# recompute.  Layout: channels on sublanes, flattened (h*W + w) on lanes.
# ---------------------------------------------------------------------------
def inverted_residual_kernel(
    x_ref,        # (1, Cin, H*W)   bf16  lane-dense NCHW image
    wexp_ref,     # (C, Cin)        bf16  BN-folded, transposed 1x1 expansion
    bexp_ref,     # (C, 1)          f32
    wdw_ref,      # (C, K*K)        f32   folded RepVGG depthwise taps (both branches)
    bdw_ref,      # (C, 1)          f32
    wproj_ref,    # (Cout, C)       bf16  BN-folded, transposed 1x1 projection
    bproj_ref,    # (Cout, 1)       f32
    maskw_ref,    # (K, Ro*W)       bf16  period-W 0/1 column-validity per dw tap
    *rest,        # [selw (W, Wo) bf16 iff stride != 1], o_ref, ybuf, [zbuf]
    H, W, K, stride, Ho, Wo, Ro, use_res,
):
    if stride == 1:
        (o_ref, ybuf_ref) = rest
        selw_ref = None
        zbuf_ref = None
    else:
        (selw_ref, o_ref, ybuf_ref, zbuf_ref) = rest

    P = K // 2
    C = wexp_ref.shape[0]

    # Small constants: loaded once, re-used for every chunk.
    wexp = wexp_ref[...]
    bexp = bexp_ref[...]
    wdw = wdw_ref[...]
    bdw = bdw_ref[...]
    wproj = wproj_ref[...]
    bproj = bproj_ref[...]
    maskw = maskw_ref[...]
    selw = selw_ref[...] if selw_ref is not None else None

    # ---- row-chunk loop (static / unrolled): bounds VMEM to one chunk ----
    for o0 in range(0, Ho, Ro):
        ro = min(Ro, Ho - o0)                       # output rows in this chunk
        in_lo = o0 * stride - P                     # first needed input row (may be < 0)
        in_hi = (o0 + ro - 1) * stride + P + 1      # one past last needed input row
        v_lo, v_hi = max(in_lo, 0), min(in_hi, H)   # valid (in-image) input rows
        ri = in_hi - in_lo                          # chunk input rows incl. halo
        pad_top = (v_lo - in_lo) * W + P            # leading zero lanes (halo rows + P cols)
        pad_bot = (in_hi - v_hi) * W + P            # trailing zero lanes
        lv = (v_hi - v_lo) * W                      # valid expansion lanes

        # ---- 1x1 expansion on the MXU (bf16 x bf16 -> f32), BN folded, ReLU6 ----
        xs = x_ref[0, :, v_lo * W:v_hi * W]                           # (Cin, lv) bf16
        yv = jnp.dot(wexp, xs, preferred_element_type=jnp.float32)    # (C, lv)  f32
        yv = _relu6(yv + bexp).astype(jnp.bfloat16)

        # ---- zero-padded chunk buffer: [P | (halo + valid) rows | P] lanes ----
        # Zero halo rows replace any H-direction mask; the P extra lanes at each
        # end keep every tap slice in-bounds (values leaking from adjacent rows
        # are killed by the column mask).
        if pad_top:
            ybuf_ref[:, 0:pad_top] = jnp.zeros((C, pad_top), jnp.bfloat16)
        ybuf_ref[:, pad_top:pad_top + lv] = yv
        if pad_bot:
            ybuf_ref[:, pad_top + lv:pad_top + lv + pad_bot] = jnp.zeros(
                (C, pad_bot), jnp.bfloat16)

        if stride == 1:
            # ---- depthwise (folded RepVGG): K*K shifted contiguous slices ----
            L = ro * W
            acc = None
            for dh in range(K):
                for dw in range(K):
                    t = dh * K + dw
                    start = dh * W + dw              # padded-chunk offset of this tap
                    sh = ybuf_ref[:, start:start + L]                 # (C, L) bf16
                    if dw != P:                       # column-boundary mask (period W)
                        sh = sh * maskw[dw:dw + 1, :L]
                    contrib = sh * wdw[:, t:t + 1]                    # -> f32
                    acc = contrib if acc is None else acc + contrib
            z = _relu6(acc + bdw).astype(jnp.bfloat16)                # (C, L)

            # ---- 1x1 projection (MXU) + folded BN (+ residual) ----
            out = jnp.dot(wproj, z, preferred_element_type=jnp.float32) + bproj
            if use_res:
                out = out + x_ref[0, :, o0 * W:(o0 + ro) * W].astype(jnp.float32)
            o_ref[0, :, o0 * W:(o0 + ro) * W] = out
        else:
            # ---- strided depthwise: one output row at a time, contiguous row
            # slices from the padded chunk; then an exact 0/1 (W, Wo) column-
            # subsample matmul on the MXU (replaces the old S x So sel matmul).
            mrow = maskw[:, :W]                                       # (K, W)
            for j in range(ro):
                accr = None
                for dh in range(K):
                    r = j * stride + dh               # chunk-relative input row
                    for dw in range(K):
                        t = dh * K + dw
                        start = r * W + dw
                        sh = ybuf_ref[:, start:start + W]             # (C, W) bf16
                        if dw != P:
                            sh = sh * mrow[dw:dw + 1, :]
                        contrib = sh * wdw[:, t:t + 1]
                        accr = contrib if accr is None else accr + contrib
                zr = _relu6(accr + bdw).astype(jnp.bfloat16)          # (C, W)
                zbuf_ref[:, j * Wo:(j + 1) * Wo] = jnp.dot(
                    zr, selw, preferred_element_type=jnp.float32).astype(jnp.bfloat16)

            zc = zbuf_ref[:, :ro * Wo]                                # (C, ro*Wo) bf16
            out = jnp.dot(wproj, zc, preferred_element_type=jnp.float32) + bproj
            o_ref[0, :, o0 * Wo:(o0 + ro) * Wo] = out


# ---------------------------------------------------------------------------
# Host-side helpers.
# ---------------------------------------------------------------------------
def _default_rows_per_chunk(Ho, W, C, K, stride):
    """Output rows per chunk: keep chunk intermediates ~<= 3 MiB, lanes >= ~1024."""
    target_lanes = 1024
    ro = max(1, min(Ho, -(-target_lanes // W)))
    while ro > 1 and C * ((ro - 1) * stride + K) * W * 10 > 3 * 2**20:
        ro -= 1
    return ro


def inverted_residual_pallas(x_nchw, params, *, stride, kernel_size, use_res,
                             rows_per_chunk=None):
    N, Cin, H, W = x_nchw.shape
    K = kernel_size
    P = K // 2
    C = params["w_exp_t"].shape[0]
    Cout = params["w_proj_t"].shape[0]
    Ho = (H + 2 * P - K) // stride + 1
    Wo = (W + 2 * P - K) // stride + 1

    Ro = rows_per_chunk or _default_rows_per_chunk(Ho, W, C, K, stride)
    Ro = max(1, min(Ro, Ho))

    # NCHW -> (N, Cin, H*W): channels on sublanes, flat spatial lane-dense.
    # bf16 input halves HBM traffic; the MXU consumes bf16 anyway.
    xg = x_nchw.reshape(N, Cin, H * W).astype(jnp.bfloat16)

    # Per-tap column-validity pattern, period W, tiled to the chunk width only
    # (no per-image tiling, no f32, no per-H-row masks — zero halo rows handle H).
    pat = np.zeros((K, W), np.float32)
    for dw in range(K):
        for w in range(W):
            if 0 <= w + dw - P < W:
                pat[dw, w] = 1.0
    Lm = Ro * W
    maskw = jnp.asarray(np.tile(pat, (1, Ro)), dtype=jnp.bfloat16)    # (K, Ro*W)

    inputs = [xg,
              params["w_exp_t"], params["b_exp"],
              params["w_dw_t"], params["b_dw"],
              params["w_proj_t"], params["b_proj"],
              maskw]
    in_specs = [
        pl.BlockSpec((1, Cin, H * W), lambda n: (n, 0, 0)),
        pl.BlockSpec((C, Cin), lambda n: (0, 0)),
        pl.BlockSpec((C, 1), lambda n: (0, 0)),
        pl.BlockSpec((C, K * K), lambda n: (0, 0)),
        pl.BlockSpec((C, 1), lambda n: (0, 0)),
        pl.BlockSpec((Cout, C), lambda n: (0, 0)),
        pl.BlockSpec((Cout, 1), lambda n: (0, 0)),
        pl.BlockSpec((K, Lm), lambda n: (0, 0)),
    ]
    sel_bytes = 0
    if stride != 1:
        selw_np = np.zeros((W, Wo), np.float32)
        for wo in range(Wo):
            selw_np[wo * stride, wo] = 1.0            # exact 0/1 in bf16
        selw = jnp.asarray(selw_np, dtype=jnp.bfloat16)
        inputs.append(selw)
        in_specs.append(pl.BlockSpec((W, Wo), lambda n: (0, 0)))
        sel_bytes = W * Wo * 2

    # Chunk-sized scratch buffers (bf16).
    ri_max = (Ro - 1) * stride + K
    ypad_lanes = ri_max * W + 2 * P
    scratch_shapes = [pltpu.VMEM((C, ypad_lanes), jnp.bfloat16)]
    if stride != 1:
        scratch_shapes.append(pltpu.VMEM((C, Ro * Wo), jnp.bfloat16))

    kern = functools.partial(
        inverted_residual_kernel,
        H=H, W=W, K=K, stride=stride, Ho=Ho, Wo=Wo, Ro=Ro, use_res=use_res)

    # Cost estimate: real work only (no selection-matmul term any more).
    flops = 2 * N * H * W * Cin * C + 2 * N * Ho * Wo * C * Cout
    if stride == 1:
        flops += 2 * N * H * W * C * K * K
    else:
        flops += 2 * N * Ho * W * C * K * K + 2 * N * Ho * C * W * Wo
    weight_bytes = (C * Cin * 2 + C * 4 + C * K * K * 4 + C * 4
                    + Cout * C * 2 + Cout * 4)
    bytes_accessed = int(N * Cin * H * W * 2 + N * Cout * Ho * Wo * 4
                         + weight_bytes + K * Lm * 2 + sel_bytes)
    cost = pl.CostEstimate(flops=int(flops), transcendentals=0,
                           bytes_accessed=bytes_accessed)

    # Explicit VMEM budget: double-buffered x/out blocks + constants + chunk
    # intermediates (bounded by the row-chunk tiling).  Capped for v7x (64 MiB).
    xblk = Cin * H * W * 2
    oblk = Cout * Ho * Wo * 4
    inter = (C * ypad_lanes * 2 + C * Ro * W * (4 * 2 + 2)
             + C * Ro * Wo * 2 + Cout * Ro * W * 4)
    vmem_bytes = int(min(max(2 * (xblk + oblk) + weight_bytes + K * Lm * 2
                             + sel_bytes + 2 * inter, 4 * 2**20), 48 * 2**20))

    out = pl.pallas_call(
        kern,
        out_shape=jax.ShapeDtypeStruct((N, Cout, Ho * Wo), jnp.float32),
        grid_spec=pltpu.PrefetchScalarGridSpec(
            num_scalar_prefetch=0,
            grid=(N,),                                # one image / step; >=2 parallel steps
            in_specs=in_specs,
            out_specs=pl.BlockSpec((1, Cout, Ho * Wo), lambda n: (n, 0, 0)),
            scratch_shapes=scratch_shapes,
        ),
        compiler_params=pltpu.CompilerParams(
            dimension_semantics=("parallel",),
            vmem_limit_bytes=vmem_bytes),
        cost_estimate=cost,
    )(*inputs)

    return out.reshape(N, Cout, Ho, Wo)


# ---------------------------------------------------------------------------
# Deterministic parameter synthesis (shapes follow the PyTorch __init__),
# with BN folding + RepVGG branch folding done once on the host (exact).
# ---------------------------------------------------------------------------
def make_params(key, inp, oup, expand_ratio, K):
    C = inp * expand_ratio
    ks = jax.random.split(key, 8)

    def bn(k, ch):
        k1, k2, k3, k4 = jax.random.split(k, 4)
        gamma = jax.random.uniform(k1, (ch,), jnp.float32, 0.5, 1.5)
        beta = jax.random.uniform(k2, (ch,), jnp.float32, -0.2, 0.2)
        mean = jax.random.uniform(k3, (ch,), jnp.float32, -0.5, 0.5)
        var = jax.random.uniform(k4, (ch,), jnp.float32, 0.5, 1.5)
        return gamma, beta, mean, var

    def fold(bn_p):
        gamma, beta, mean, var = bn_p
        scale = gamma / jnp.sqrt(var + BN_EPS)
        bias = beta - mean * scale
        return scale, bias

    # conv weights in HWIO layout (as the reference conv expects)
    w_pw_hwio = 0.2 * jax.random.normal(ks[0], (1, 1, inp, C), jnp.float32)
    w_dw1_hwio = 0.2 * jax.random.normal(ks[1], (K, K, 1, C), jnp.float32)
    w_dw2_hwio = 0.2 * jax.random.normal(ks[2], (K, K, 1, C), jnp.float32)
    w_proj_hwio = 0.2 * jax.random.normal(ks[3], (1, 1, C, oup), jnp.float32)

    bn_pw, bn_dw1, bn_dw2, bn_proj = bn(ks[4], C), bn(ks[5], C), bn(ks[6], C), bn(ks[7], oup)
    s_pw, b_pw = fold(bn_pw)
    s_d1, b_d1 = fold(bn_dw1)
    s_d2, b_d2 = fold(bn_dw2)
    s_pj, b_pj = fold(bn_proj)

    # BN scale folded into the matmul weights (transposed, out-channel major), bf16 for MXU.
    w_exp_t = (w_pw_hwio[0, 0].T * s_pw[:, None]).astype(jnp.bfloat16)     # (C, Cin)
    w_proj_t = (w_proj_hwio[0, 0].T * s_pj[:, None]).astype(jnp.bfloat16)  # (Cout, C)

    # RepVGG depthwise: fold the two conv+BN branches (exact) into one tap set.
    w_dw1 = w_dw1_hwio.reshape(K * K, C)
    w_dw2 = w_dw2_hwio.reshape(K * K, C)
    w_dw_t = (0.5 * (w_dw1 * s_d1[None, :] + w_dw2 * s_d2[None, :])).T      # (C, K*K) f32
    b_dw = (0.5 * (b_d1 + b_d2))[:, None]                                   # (C, 1)

    return {
        "w_exp_t": w_exp_t,
        "b_exp": b_pw[:, None],
        "w_dw_t": w_dw_t,
        "b_dw": b_dw,
        "w_proj_t": w_proj_t,
        "b_proj": b_pj[:, None],
        # raw forms for the pure-JAX reference
        "_hwio": (w_pw_hwio, w_dw1_hwio, w_dw2_hwio, w_proj_hwio),
        "_bn": (bn_pw, bn_dw1, bn_dw2, bn_proj),
    }


# ---------------------------------------------------------------------------
# Pure-JAX reference (lax.conv_general_dilated, full f32) for correctness.
# ---------------------------------------------------------------------------
def ref_forward(x_nhwc, params, *, stride, kernel_size, use_res):
    K = kernel_size
    P = K // 2
    w_pw, w_dw1, w_dw2, w_proj = params["_hwio"]
    bn_pw, bn_dw1, bn_dw2, bn_proj = params["_bn"]
    C = w_pw.shape[-1]
    dn = ("NHWC", "HWIO", "NHWC")

    def bn_apply(x, p):
        gamma, beta, mean, var = p
        return (x - mean) / jnp.sqrt(var + BN_EPS) * gamma + beta

    y = lax.conv_general_dilated(x_nhwc, w_pw, (1, 1), "VALID",
                                 dimension_numbers=dn,
                                 precision=lax.Precision.HIGHEST)
    y = _relu6(bn_apply(y, bn_pw))

    def dw(w):
        return lax.conv_general_dilated(y, w, (stride, stride),
                                        [(P, P), (P, P)],
                                        dimension_numbers=dn,
                                        feature_group_count=C,
                                        precision=lax.Precision.HIGHEST)

    z = _relu6((bn_apply(dw(w_dw1), bn_dw1) + bn_apply(dw(w_dw2), bn_dw2)) * 0.5)

    out = lax.conv_general_dilated(z, w_proj, (1, 1), "VALID",
                                   dimension_numbers=dn,
                                   precision=lax.Precision.HIGHEST)
    out = bn_apply(out, bn_proj)
    if use_res:
        out = out + x_nhwc
    return out


if __name__ == "__main__":
    key = jax.random.PRNGKey(0)
    configs = [
        # (inp, oup, stride, expand_ratio, K, N, H, W, rows_per_chunk)
        (4, 4, 1, 4, 3, 2, 16, 16, None),   # stride-1 + residual, single row-chunk
        (4, 8, 2, 3, 3, 2, 16, 16, None),   # stride-2, single row-chunk
        (4, 4, 1, 4, 3, 2, 16, 16, 6),      # stride-1 + residual, 3 row-chunks (halo recompute)
        (4, 8, 2, 3, 3, 2, 16, 16, 3),      # stride-2, 3 row-chunks
    ]
    for (inp, oup, stride, t, K, N, H, W, rpc) in configs:
        use_res = (stride == 1 and inp == oup)
        kx, kp, key = jax.random.split(key, 3)
        x_nchw = jax.random.normal(kx, (N, inp, H, W), jnp.float32)  # PyTorch-style NCHW
        params = make_params(kp, inp, oup, t, K)

        out_nchw = inverted_residual_pallas(
            x_nchw, params, stride=stride, kernel_size=K, use_res=use_res,
            rows_per_chunk=rpc)
        out_nchw = jax.block_until_ready(out_nchw)

        x_nhwc = jnp.transpose(x_nchw, (0, 2, 3, 1))
        ref_nhwc = ref_forward(x_nhwc, params, stride=stride, kernel_size=K, use_res=use_res)
        ref_nchw = jnp.transpose(ref_nhwc, (0, 3, 1, 2))

        # Tolerance accounts for the intentional bf16 I/O + bf16 activation storage
        # + bf16 MXU matmuls (f32 accumulation) vs. the full-f32 reference.
        np.testing.assert_allclose(np.asarray(out_nchw), np.asarray(ref_nchw),
                                   rtol=4e-2, atol=1e-1)
        assert out_nchw.shape == (N, oup, H // stride, W // stride)
    print("KERNEL_OK")
</pallas_src>

<mosaic_0001>
module attributes {stable_mosaic.version = 11 : i64} {
  func.func @inverted_residual_kernel(%arg0: i32, %arg1: memref<1x4x256xbf16, #tpu.memory_space<vmem>>, %arg2: memref<16x4xbf16, #tpu.memory_space<vmem>>, %arg3: memref<16x1xf32, #tpu.memory_space<vmem>>, %arg4: memref<16x9xf32, #tpu.memory_space<vmem>>, %arg5: memref<16x1xf32, #tpu.memory_space<vmem>>, %arg6: memref<4x16xbf16, #tpu.memory_space<vmem>>, %arg7: memref<4x1xf32, #tpu.memory_space<vmem>>, %arg8: memref<3x256xbf16, #tpu.memory_space<vmem>>, %arg9: memref<1x4x256xf32, #tpu.memory_space<vmem>>, %arg10: memref<16x290xbf16, #tpu.memory_space<vmem>>) attributes {dimension_semantics = [#tpu.dimension_semantics<parallel>], iteration_bounds = array<i64: 2>, scalar_prefetch = 0 : i64, scratch_operands = 1 : i64, tpu.core_type = #tpu.core_type<tc>, window_params = [{transform_indices = @transform_0, window_bounds = array<i64: 1, 4, 256>}, {pipeline_mode = #tpu.pipeline_mode<synchronous>, transform_indices = @transform_1, window_bounds = array<i64: 16, 4>}, {pipeline_mode = #tpu.pipeline_mode<synchronous>, transform_indices = @transform_2, window_bounds = array<i64: 16, 1>}, {pipeline_mode = #tpu.pipeline_mode<synchronous>, transform_indices = @transform_3, window_bounds = array<i64: 16, 9>}, {pipeline_mode = #tpu.pipeline_mode<synchronous>, transform_indices = @transform_4, window_bounds = array<i64: 16, 1>}, {pipeline_mode = #tpu.pipeline_mode<synchronous>, transform_indices = @transform_5, window_bounds = array<i64: 4, 16>}, {pipeline_mode = #tpu.pipeline_mode<synchronous>, transform_indices = @transform_6, window_bounds = array<i64: 4, 1>}, {pipeline_mode = #tpu.pipeline_mode<synchronous>, transform_indices = @transform_7, window_bounds = array<i64: 3, 256>}, {transform_indices = @transform_8, window_bounds = array<i64: 1, 4, 256>}]} {
    %c0 = arith.constant 0 : index
    %c0_0 = arith.constant 0 : index
    %0 = vector.load %arg2[%c0, %c0_0] : memref<16x4xbf16, #tpu.memory_space<vmem>>, vector<16x4xbf16>
    %c0_1 = arith.constant 0 : index
    %c0_2 = arith.constant 0 : index
    %1 = vector.load %arg3[%c0_1, %c0_2] : memref<16x1xf32, #tpu.memory_space<vmem>>, vector<16x1xf32>
    %c0_3 = arith.constant 0 : index
    %c0_4 = arith.constant 0 : index
    %2 = vector.load %arg4[%c0_3, %c0_4] : memref<16x9xf32, #tpu.memory_space<vmem>>, vector<16x9xf32>
    %c0_5 = arith.constant 0 : index
    %c0_6 = arith.constant 0 : index
    %3 = vector.load %arg5[%c0_5, %c0_6] : memref<16x1xf32, #tpu.memory_space<vmem>>, vector<16x1xf32>
    %c0_7 = arith.constant 0 : index
    %c0_8 = arith.constant 0 : index
    %4 = vector.load %arg6[%c0_7, %c0_8] : memref<4x16xbf16, #tpu.memory_space<vmem>>, vector<4x16xbf16>
    %c0_9 = arith.constant 0 : index
    %c0_10 = arith.constant 0 : index
    %5 = vector.load %arg7[%c0_9, %c0_10] : memref<4x1xf32, #tpu.memory_space<vmem>>, vector<4x1xf32>
    %c0_11 = arith.constant 0 : index
    %c0_12 = arith.constant 0 : index
    %6 = vector.load %arg8[%c0_11, %c0_12] : memref<3x256xbf16, #tpu.memory_space<vmem>>, vector<3x256xbf16>
    %c0_13 = arith.constant 0 : index
    %c0_14 = arith.constant 0 : index
    %c0_15 = arith.constant 0 : index
    %7 = vector.load %arg1[%c0_13, %c0_14, %c0_15] : memref<1x4x256xbf16, #tpu.memory_space<vmem>>, vector<1x4x256xbf16>
    %8 = vector.shape_cast %7 : vector<1x4x256xbf16> to vector<4x256xbf16>
    %cst = arith.constant dense<0.000000e+00> : vector<16x256xf32>
    %9 = tpu.matmul %0, %8, %cst {dimension_numbers = #tpu.dot_dimension_numbers<[1], [0], [0], [1], [0, 0, 1, 1], [], []>} : vector<16x4xbf16>, vector<4x256xbf16>, vector<16x256xf32> -> vector<16x256xf32>
    %10 = vector.broadcast %1 : vector<16x1xf32> to vector<16x256xf32>
    %11 = arith.addf %9, %10 : vector<16x256xf32>
    %cst_16 = arith.constant 0.000000e+00 : f32
    %12 = vector.broadcast %cst_16 : f32 to vector<16x256xf32>
    %13 = arith.maximumf %11, %12 : vector<16x256xf32>
    %cst_17 = arith.constant 6.000000e+00 : f32
    %14 = vector.broadcast %cst_17 : f32 to vector<16x256xf32>
    %15 = arith.minimumf %13, %14 : vector<16x256xf32>
    %16 = arith.truncf %15 : vector<16x256xf32> to vector<16x256xbf16>
    %cst_18 = arith.constant 0.000000e+00 : bf16
    %17 = vector.broadcast %cst_18 : bf16 to vector<16x17xbf16>
    %c0_19 = arith.constant 0 : index
    %c0_20 = arith.constant 0 : index
    %18 = vector.load %arg10[%c0_19, %c0_20] : memref<16x290xbf16, #tpu.memory_space<vmem>>, vector<16x17xbf16>
    tpu.vector_store %arg10[%c0_19, %c0_20], %17 {strides = array<i32>} : memref<16x290xbf16, #tpu.memory_space<vmem>>, vector<16x17xbf16>,
    %c0_21 = arith.constant 0 : index
    %c17 = arith.constant 17 : index
    %19 = vector.load %arg10[%c0_21, %c17] : memref<16x290xbf16, #tpu.memory_space<vmem>>, vector<16x256xbf16>
    tpu.vector_store %arg10[%c0_21, %c17], %16 {strides = array<i32>} : memref<16x290xbf16, #tpu.memory_space<vmem>>, vector<16x256xbf16>,
    %cst_22 = arith.constant 0.000000e+00 : bf16
    %20 = vector.broadcast %cst_22 : bf16 to vector<16x17xbf16>
    %c0_23 = arith.constant 0 : index
    %c273 = arith.constant 273 : index
    %21 = vector.load %arg10[%c0_23, %c273] : memref<16x290xbf16, #tpu.memory_space<vmem>>, vector<16x17xbf16>
    tpu.vector_store %arg10[%c0_23, %c273], %20 {strides = array<i32>} : memref<16x290xbf16, #tpu.memory_space<vmem>>, vector<16x17xbf16>,
    %c0_24 = arith.constant 0 : index
    %c0_25 = arith.constant 0 : index
    %22 = vector.load %arg10[%c0_24, %c0_25] : memref<16x290xbf16, #tpu.memory_space<vmem>>, vector<16x256xbf16>
    %23 = vector.extract_strided_slice %6 {offsets = [0, 0], sizes = [1, 256], strides = [1, 1]} : vector<3x256xbf16> to vector<1x256xbf16>
    %24 = vector.broadcast %23 : vector<1x256xbf16> to vector<16x256xbf16>
    %25 = arith.mulf %22, %24 : vector<16x256xbf16>
    %26 = vector.extract_strided_slice %2 {offsets = [0, 0], sizes = [16, 1], strides = [1, 1]} : vector<16x9xf32> to vector<16x1xf32>
    %27 = arith.extf %25 : vector<16x256xbf16> to vector<16x256xf32>
    %28 = vector.broadcast %26 : vector<16x1xf32> to vector<16x256xf32>
    %29 = arith.mulf %27, %28 : vector<16x256xf32>
    %c0_26 = arith.constant 0 : index
    %c1 = arith.constant 1 : index
    %30 = vector.load %arg10[%c0_26, %c1] : memref<16x290xbf16, #tpu.memory_space<vmem>>, vector<16x256xbf16>
    %31 = vector.extract_strided_slice %2 {offsets = [0, 1], sizes = [16, 1], strides = [1, 1]} : vector<16x9xf32> to vector<16x1xf32>
    %32 = arith.extf %30 : vector<16x256xbf16> to vector<16x256xf32>
    %33 = vector.broadcast %31 : vector<16x1xf32> to vector<16x256xf32>
    %34 = arith.mulf %32, %33 : vector<16x256xf32>
    %35 = arith.addf %29, %34 : vector<16x256xf32>
    %c0_27 = arith.constant 0 : index
    %c2 = arith.constant 2 : index
    %36 = vector.load %arg10[%c0_27, %c2] : memref<16x290xbf16, #tpu.memory_space<vmem>>, vector<16x256xbf16>
    %37 = vector.extract_strided_slice %6 {offsets = [2, 0], sizes = [1, 256], strides = [1, 1]} : vector<3x256xbf16> to vector<1x256xbf16>
    %38 = vector.broadcast %37 : vector<1x256xbf16> to vector<16x256xbf16>
    %39 = arith.mulf %36, %38 : vector<16x256xbf16>
    %40 = vector.extract_strided_slice %2 {offsets = [0, 2], sizes = [16, 1], strides = [1, 1]} : vector<16x9xf32> to vector<16x1xf32>
    %41 = arith.extf %39 : vector<16x256xbf16> to vector<16x256xf32>
    %42 = vector.broadcast %40 : vector<16x1xf32> to vector<16x256xf32>
    %43 = arith.mulf %41, %42 : vector<16x256xf32>
    %44 = arith.addf %35, %43 : vector<16x256xf32>
    %c0_28 = arith.constant 0 : index
    %c16 = arith.constant 16 : index
    %45 = vector.load %arg10[%c0_28, %c16] : memref<16x290xbf16, #tpu.memory_space<vmem>>, vector<16x256xbf16>
    %46 = vector.extract_strided_slice %6 {offsets = [0, 0], sizes = [1, 256], strides = [1, 1]} : vector<3x256xbf16> to vector<1x256xbf16>
    %47 = vector.broadcast %46 : vector<1x256xbf16> to vector<16x256xbf16>
    %48 = arith.mulf %45, %47 : vector<16x256xbf16>
    %49 = vector.extract_strided_slice %2 {offsets = [0, 3], sizes = [16, 1], strides = [1, 1]} : vector<16x9xf32> to vector<16x1xf32>
    %50 = arith.extf %48 : vector<16x256xbf16> to vector<16x256xf32>
    %51 = vector.broadcast %49 : vector<16x1xf32> to vector<16x256xf32>
    %52 = arith.mulf %50, %51 : vector<16x256xf32>
    %53 = arith.addf %44, %52 : vector<16x256xf32>
    %c0_29 = arith.constant 0 : index
    %c17_30 = arith.constant 17 : index
    %54 = vector.load %arg10[%c0_29, %c17_30] : memref<16x290xbf16, #tpu.memory_space<vmem>>, vector<16x256xbf16>
    %55 = vector.extract_strided_slice %2 {offsets = [0, 4], sizes = [16, 1], strides = [1, 1]} : vector<16x9xf32> to vector<16x1xf32>
    %56 = arith.extf %54 : vector<16x256xbf16> to vector<16x256xf32>
    %57 = vector.broadcast %55 : vector<16x1xf32> to vector<16x256xf32>
    %58 = arith.mulf %56, %57 : vector<16x256xf32>
    %59 = arith.addf %53, %58 : vector<16x256xf32>
    %c0_31 = arith.constant 0 : index
    %c18 = arith.constant 18 : index
    %60 = vector.load %arg10[%c0_31, %c18] : memref<16x290xbf16, #tpu.memory_space<vmem>>, vector<16x256xbf16>
    %61 = vector.extract_strided_slice %6 {offsets = [2, 0], sizes = [1, 256], strides = [1, 1]} : vector<3x256xbf16> to vector<1x256xbf16>
    %62 = vector.broadcast %61 : vector<1x256xbf16> to vector<16x256xbf16>
    %63 = arith.mulf %60, %62 : vector<16x256xbf16>
    %64 = vector.extract_strided_slice %2 {offsets = [0, 5], sizes = [16, 1], strides = [1, 1]} : vector<16x9xf32> to vector<16x1xf32>
    %65 = arith.extf %63 : vector<16x256xbf16> to vector<16x256xf32>
    %66 = vector.broadcast %64 : vector<16x1xf32> to vector<16x256xf32>
    %67 = arith.mulf %65, %66 : vector<16x256xf32>
    %68 = arith.addf %59, %67 : vector<16x256xf32>
    %c0_32 = arith.constant 0 : index
    %c32 = arith.constant 32 : index
    %69 = vector.load %arg10[%c0_32, %c32] : memref<16x290xbf16, #tpu.memory_space<vmem>>, vector<16x256xbf16>
    %70 = vector.extract_strided_slice %6 {offsets = [0, 0], sizes = [1, 256], strides = [1, 1]} : vector<3x256xbf16> to vector<1x256xbf16>
    %71 = vector.broadcast %70 : vector<1x256xbf16> to vector<16x256xbf16>
    %72 = arith.mulf %69, %71 : vector<16x256xbf16>
    %73 = vector.extract_strided_slice %2 {offsets = [0, 6], sizes = [16, 1], strides = [1, 1]} : vector<16x9xf32> to vector<16x1xf32>
    %74 = arith.extf %72 : vector<16x256xbf16> to vector<16x256xf32>
    %75 = vector.broadcast %73 : vector<16x1xf32> to vector<16x256xf32>
    %76 = arith.mulf %74, %75 : vector<16x256xf32>
    %77 = arith.addf %68, %76 : vector<16x256xf32>
    %c0_33 = arith.constant 0 : index
    %c33 = arith.constant 33 : index
    %78 = vector.load %arg10[%c0_33, %c33] : memref<16x290xbf16, #tpu.memory_space<vmem>>, vector<16x256xbf16>
    %79 = vector.extract_strided_slice %2 {offsets = [0, 7], sizes = [16, 1], strides = [1, 1]} : vector<16x9xf32> to vector<16x1xf32>
    %80 = arith.extf %78 : vector<16x256xbf16> to vector<16x256xf32>
    %81 = vector.broadcast %79 : vector<16x1xf32> to vector<16x256xf32>
    %82 = arith.mulf %80, %81 : vector<16x256xf32>
    %83 = arith.addf %77, %82 : vector<16x256xf32>
    %c0_34 = arith.constant 0 : index
    %c34 = arith.constant 34 : index
    %84 = vector.load %arg10[%c0_34, %c34] : memref<16x290xbf16, #tpu.memory_space<vmem>>, vector<16x256xbf16>
    %85 = vector.extract_strided_slice %6 {offsets = [2, 0], sizes = [1, 256], strides = [1, 1]} : vector<3x256xbf16> to vector<1x256xbf16>
    %86 = vector.broadcast %85 : vector<1x256xbf16> to vector<16x256xbf16>
    %87 = arith.mulf %84, %86 : vector<16x256xbf16>
    %88 = vector.extract_strided_slice %2 {offsets = [0, 8], sizes = [16, 1], strides = [1, 1]} : vector<16x9xf32> to vector<16x1xf32>
    %89 = arith.extf %87 : vector<16x256xbf16> to vector<16x256xf32>
    %90 = vector.broadcast %88 : vector<16x1xf32> to vector<16x256xf32>
    %91 = arith.mulf %89, %90 : vector<16x256xf32>
    %92 = arith.addf %83, %91 : vector<16x256xf32>
    %93 = vector.broadcast %3 : vector<16x1xf32> to vector<16x256xf32>
    %94 = arith.addf %92, %93 : vector<16x256xf32>
    %cst_35 = arith.constant 0.000000e+00 : f32
    %95 = vector.broadcast %cst_35 : f32 to vector<16x256xf32>
    %96 = arith.maximumf %94, %95 : vector<16x256xf32>
    %cst_36 = arith.constant 6.000000e+00 : f32
    %97 = vector.broadcast %cst_36 : f32 to vector<16x256xf32>
    %98 = arith.minimumf %96, %97 : vector<16x256xf32>
    %99 = arith.truncf %98 : vector<16x256xf32> to vector<16x256xbf16>
    %cst_37 = arith.constant dense<0.000000e+00> : vector<4x256xf32>
    %100 = tpu.matmul %4, %99, %cst_37 {dimension_numbers = #tpu.dot_dimension_numbers<[1], [0], [0], [1], [0, 0, 1, 1], [], []>} : vector<4x16xbf16>, vector<16x256xbf16>, vector<4x256xf32> -> vector<4x256xf32>
    %101 = vector.broadcast %5 : vector<4x1xf32> to vector<4x256xf32>
    %102 = arith.addf %100, %101 : vector<4x256xf32>
    %c0_38 = arith.constant 0 : index
    %c0_39 = arith.constant 0 : index
    %c0_40 = arith.constant 0 : index
    %103 = vector.load %arg1[%c0_38, %c0_39, %c0_40] : memref<1x4x256xbf16, #tpu.memory_space<vmem>>, vector<1x4x256xbf16>
    %104 = vector.shape_cast %103 : vector<1x4x256xbf16> to vector<4x256xbf16>
    %105 = arith.extf %104 : vector<4x256xbf16> to vector<4x256xf32>
    %106 = arith.addf %102, %105 : vector<4x256xf32>
    %c0_41 = arith.constant 0 : index
    %c0_42 = arith.constant 0 : index
    %c0_43 = arith.constant 0 : index
    %107 = vector.load %arg9[%c0_41, %c0_42, %c0_43] : memref<1x4x256xf32, #tpu.memory_space<vmem>>, vector<1x4x256xf32>
    %108 = vector.shape_cast %107 : vector<1x4x256xf32> to vector<4x256xf32>
    %109 = vector.shape_cast %106 : vector<4x256xf32> to vector<1x4x256xf32>
    tpu.vector_store %arg9[%c0_41, %c0_42, %c0_43], %109 {strides = array<i32>} : memref<1x4x256xf32, #tpu.memory_space<vmem>>, vector<1x4x256xf32>,
    return
  }
  func.func @transform_0(%arg0: i32) -> (i32, i32, i32) {
    %c0_i32 = arith.constant 0 : i32
    %c0_i32_0 = arith.constant 0 : i32
    %c0_i32_1 = arith.constant 0 : i32
    return %arg0, %c0_i32, %c0_i32_0 : i32, i32, i32
  }
  func.func @transform_1(%arg0: i32) -> (i32, i32) {
    %c0_i32 = arith.constant 0 : i32
    %c0_i32_0 = arith.constant 0 : i32
    %c0_i32_1 = arith.constant 0 : i32
    return %c0_i32, %c0_i32_0 : i32, i32
  }
  func.func @transform_2(%arg0: i32) -> (i32, i32) {
    %c0_i32 = arith.constant 0 : i32
    %c0_i32_0 = arith.constant 0 : i32
    %c0_i32_1 = arith.constant 0 : i32
    return %c0_i32, %c0_i32_0 : i32, i32
  }
  func.func @transform_3(%arg0: i32) -> (i32, i32) {
    %c0_i32 = arith.constant 0 : i32
    %c0_i32_0 = arith.constant 0 : i32
    %c0_i32_1 = arith.constant 0 : i32
    return %c0_i32, %c0_i32_0 : i32, i32
  }
  func.func @transform_4(%arg0: i32) -> (i32, i32) {
    %c0_i32 = arith.constant 0 : i32
    %c0_i32_0 = arith.constant 0 : i32
    %c0_i32_1 = arith.constant 0 : i32
    return %c0_i32, %c0_i32_0 : i32, i32
  }
  func.func @transform_5(%arg0: i32) -> (i32, i32) {
    %c0_i32 = arith.constant 0 : i32
    %c0_i32_0 = arith.constant 0 : i32
    %c0_i32_1 = arith.constant 0 : i32
    return %c0_i32, %c0_i32_0 : i32, i32
  }
  func.func @transform_6(%arg0: i32) -> (i32, i32) {
    %c0_i32 = arith.constant 0 : i32
    %c0_i32_0 = arith.constant 0 : i32
    %c0_i32_1 = arith.constant 0 : i32
    return %c0_i32, %c0_i32_0 : i32, i32
  }
  func.func @transform_7(%arg0: i32) -> (i32, i32) {
    %c0_i32 = arith.constant 0 : i32
    %c0_i32_0 = arith.constant 0 : i32
    %c0_i32_1 = arith.constant 0 : i32
    return %c0_i32, %c0_i32_0 : i32, i32
  }
  func.func @transform_8(%arg0: i32) -> (i32, i32, i32) {
    %c0_i32 = arith.constant 0 : i32
    %c0_i32_0 = arith.constant 0 : i32
    %c0_i32_1 = arith.constant 0 : i32
    return %arg0, %c0_i32, %c0_i32_0 : i32, i32, i32
  }
}

</mosaic_0001>

<llo_original>
// kernel: tpu_custom_call.1
$region0: #{tpu_custom_call.1}
  #allocation0 [shape = 'u32[]', space=smem, size = 0x4, offset = 0x4, fixed_abs, tag = 'smem constant byte address 0x4 - core index']
  #allocation1 [shape = 'u32[144,128]{1,0:T(1,128)}', space=vmem, size = 0x12000, scoped, tag = 'internal scratch']
  #allocation2 [shape = 'bf16[16,290]{1,0:T(16,128)(2,1)}', space=vmem, size = 0x3000, scoped, tag = 'scratch operand']
  %s0 = inlined_call_operand.vmem [shape: bf16[2,4,256], index: 0, kind: input, shape index: {}]
  %s1 = inlined_call_operand.vmem [shape: bf16[16,4], index: 1, kind: input, shape index: {}]
  %s2 = inlined_call_operand.vmem [shape: f32[16,1], index: 2, kind: input, shape index: {}]
  %s3 = inlined_call_operand.vmem [shape: f32[16,9], index: 3, kind: input, shape index: {}]
  %s4 = inlined_call_operand.vmem [shape: f32[16,1], index: 4, kind: input, shape index: {}]
  %s5 = inlined_call_operand.vmem [shape: bf16[4,16], index: 5, kind: input, shape index: {}]
  %s6 = inlined_call_operand.vmem [shape: f32[4,1], index: 6, kind: input, shape index: {}]
  %s7 = inlined_call_operand.vmem [shape: bf16[3,256], index: 7, kind: input, shape index: {}]
  %s8 = inlined_call_operand.hbm [shape: f32[2,4,256], index: 8, kind: output, shape index: {}]
  %s9 = sld [smem:[#allocation0]]
  $region65: #{tpu_custom_call.1} parent=0
    _
  %s11 = ssub.s32 1, %s9
  %s12 = scalar_select 0, %s11, %s9
  $region1: #{tpu_custom_call.1} parent=0
    #allocation3 [shape = 'u8[8192]{0}', space=vmem, size = 0x2000, scoped, tag = 'output window, operand 0']
    #allocation4 [shape = 's32[2]{0}', space=sflag, size = 0x8, scoped, tag = 'scoped memory for tpu_custom_call.1']
    %13 = vsyncpa [#allocation4], 0
    %s14 = scalar_lea.sflag [#allocation4], 1
    %15 = vsyncpa %s14, 0
    loop: start=0, step=1, limit=4
    $region2: #{tpu_custom_call.1} parent=1 // loop_pre_header
      _
    $region3: #{tpu_custom_call.1} parent=1 // loop_header
      %s17 = sphi 0, %s21
      %p18 = scmp.ge.s32.totalorder %s17, 4
      %s27 = sphi 0, %s29
      %s30 = sphi 0, %s27
      %s31 = sphi 0, %s30
      %s47 = sphi 0, %s31
      %s51 = sphi 0, %s51
      %s53 = sphi 0, %s51
      %s54 = sphi 0, %s53
      %s68 = sphi 0, %s54
      %s72 = sphi 0, %s72
      %s74 = sphi 0, %s72
      %s75 = sphi 0, %s74
      %s89 = sphi 0, %s75
      %s93 = sphi 0, %s93
      %s95 = sphi 0, %s93
      %s96 = sphi 0, %s95
      %s110 = sphi 0, %s96
      %s114 = sphi 0, %s114
      %s116 = sphi 0, %s114
      %s117 = sphi 0, %s116
      %s131 = sphi 0, %s117
      %s135 = sphi 0, %s135
      %s137 = sphi 0, %s135
      %s138 = sphi 0, %s137
      %s152 = sphi 0, %s138
      %s156 = sphi 0, %s156
      %s158 = sphi 0, %s156
      %s159 = sphi 0, %s158
      %s173 = sphi 0, %s159
      %s177 = sphi 0, %s177
      %s179 = sphi 0, %s177
      %s180 = sphi 0, %s179
      %s194 = sphi 0, %s180
      %s200 = sphi 0, %s202
      %s203 = sphi 0, %s200
      %s204 = sphi 0, %s203
      %s220 = sphi 0, %s204
    $region4: #{tpu_custom_call.1} parent=1 // loop_header_branch
      %20 = sbr.rel (%p18) target = $region8
    $region5: #{tpu_custom_call.1} parent=1 // loop_body
      %s22 = ssub.s32 %s17, 1
      %s23 = ssub.s32 %s17, 2
      %s24 = sadd.s32 %s17, 1
      %s25 = ssub.s32 %s17, %s24
      %p26 = scmp.eq.s32.totalorder %s25, 0
      %s28 = sadd.s32 %s27, 1
      %s29 = scalar_select %p26, %s27, %s28
      %p32 = pneg %p26
      %p33 = scmp.eq.s32.totalorder %s17, 1
      %p34 = por %p32, %p33
      %p35 = scmp.ne.s32.totalorder %s27, %s30
      %p36 = scmp.eq.s32.totalorder %s17, 0
      %p37 = por %p35, %p36
      %p38 = scmp.ne.s32.totalorder %s27, %s30
      %p39 = scmp.eq.s32.totalorder %s22, 1
      %p40 = por %p38, %p39
      %p41 = scmp.ne.s32.totalorder %s30, %s31
      %p42 = scmp.eq.s32.totalorder %s22, 0
      %p43 = por %p41, %p42
      %p44 = scmp.ne.s32.totalorder %s30, %s31
      %p45 = scmp.eq.s32.totalorder %s23, 1
      %p46 = por %p44, %p45
      %p48 = scmp.ne.s32.totalorder %s31, %s47
      %p49 = scmp.eq.s32.totalorder %s23, 0
      %p50 = por %p48, %p49
      %s52 = sadd.s32 %s51, 1
      %p55 = scmp.eq.s32.totalorder %s17, 1
      %p56 = scmp.ne.s32.totalorder %s51, %s53
      %p57 = scmp.eq.s32.totalorder %s17, 0
      %p58 = por %p56, %p57
      %p59 = scmp.ne.s32.totalorder %s51, %s53
      %p60 = scmp.eq.s32.totalorder %s22, 1
      %p61 = por %p59, %p60
      %p62 = scmp.ne.s32.totalorder %s53, %s54
      %p63 = scmp.eq.s32.totalorder %s22, 0
      %p64 = por %p62, %p63
      %p65 = scmp.ne.s32.totalorder %s53, %s54
      %p66 = scmp.eq.s32.totalorder %s23, 1
      %p67 = por %p65, %p66
      %p69 = scmp.ne.s32.totalorder %s54, %s68
      %p70 = scmp.eq.s32.totalorder %s23, 0
      %p71 = por %p69, %p70
      %s73 = sadd.s32 %s72, 1
      %p76 = scmp.eq.s32.totalorder %s17, 1
      %p77 = scmp.ne.s32.totalorder %s72, %s74
      %p78 = scmp.eq.s32.totalorder %s17, 0
      %p79 = por %p77, %p78
      %p80 = scmp.ne.s32.totalorder %s72, %s74
      %p81 = scmp.eq.s32.totalorder %s22, 1
      %p82 = por %p80, %p81
      %p83 = scmp.ne.s32.totalorder %s74, %s75
      %p84 = scmp.eq.s32.totalorder %s22, 0
      %p85 = por %p83, %p84
      %p86 = scmp.ne.s32.totalorder %s74, %s75
      %p87 = scmp.eq.s32.totalorder %s23, 1
      %p88 = por %p86, %p87
      %p90 = scmp.ne.s32.totalorder %s75, %s89
      %p91 = scmp.eq.s32.totalorder %s23, 0
      %p92 = por %p90, %p91
      %s94 = sadd.s32 %s93, 1
      %p97 = scmp.eq.s32.totalorder %s17, 1
      %p98 = scmp.ne.s32.totalorder %s93, %s95
      %p99 = scmp.eq.s32.totalorder %s17, 0
      %p100 = por %p98, %p99
      %p101 = scmp.ne.s32.totalorder %s93, %s95
      %p102 = scmp.eq.s32.totalorder %s22, 1
      %p103 = por %p101, %p102
      %p104 = scmp.ne.s32.totalorder %s95, %s96
      %p105 = scmp.eq.s32.totalorder %s22, 0
      %p106 = por %p104, %p105
      %p107 = scmp.ne.s32.totalorder %s95, %s96
      %p108 = scmp.eq.s32.totalorder %s23, 1
      %p109 = por %p107, %p108
      %p111 = scmp.ne.s32.totalorder %s96, %s110
      %p112 = scmp.eq.s32.totalorder %s23, 0
      %p113 = por %p111, %p112
      %s115 = sadd.s32 %s114, 1
      %p118 = scmp.eq.s32.totalorder %s17, 1
      %p119 = scmp.ne.s32.totalorder %s114, %s116
      %p120 = scmp.eq.s32.totalorder %s17, 0
      %p121 = por %p119, %p120
      %p122 = scmp.ne.s32.totalorder %s114, %s116
      %p123 = scmp.eq.s32.totalorder %s22, 1
      %p124 = por %p122, %p123
      %p125 = scmp.ne.s32.totalorder %s116, %s117
      %p126 = scmp.eq.s32.totalorder %s22, 0
      %p127 = por %p125, %p126
      %p128 = scmp.ne.s32.totalorder %s116, %s117
      %p129 = scmp.eq.s32.totalorder %s23, 1
      %p130 = por %p128, %p129
      %p132 = scmp.ne.s32.totalorder %s117, %s131
      %p133 = scmp.eq.s32.totalorder %s23, 0
      %p134 = por %p132, %p133
      %s136 = sadd.s32 %s135, 1
      %p139 = scmp.eq.s32.totalorder %s17, 1
      %p140 = scmp.ne.s32.totalorder %s135, %s137
      %p141 = scmp.eq.s32.totalorder %s17, 0
      %p142 = por %p140, %p141
      %p143 = scmp.ne.s32.totalorder %s135, %s137
      %p144 = scmp.eq.s32.totalorder %s22, 1
      %p145 = por %p143, %p144
      %p146 = scmp.ne.s32.totalorder %s137, %s138
      %p147 = scmp.eq.s32.totalorder %s22, 0
      %p148 = por %p146, %p147
      %p149 = scmp.ne.s32.totalorder %s137, %s138
      %p150 = scmp.eq.s32.totalorder %s23, 1
      %p151 = por %p149, %p150
      %p153 = scmp.ne.s32.totalorder %s138, %s152
      %p154 = scmp.eq.s32.totalorder %s23, 0
      %p155 = por %p153, %p154
      %s157 = sadd.s32 %s156, 1
      %p160 = scmp.eq.s32.totalorder %s17, 1
      %p161 = scmp.ne.s32.totalorder %s156, %s158
      %p162 = scmp.eq.s32.totalorder %s17, 0
      %p163 = por %p161, %p162
      %p164 = scmp.ne.s32.totalorder %s156, %s158
      %p165 = scmp.eq.s32.totalorder %s22, 1
      %p166 = por %p164, %p165
      %p167 = scmp.ne.s32.totalorder %s158, %s159
      %p168 = scmp.eq.s32.totalorder %s22, 0
      %p169 = por %p167, %p168
      %p170 = scmp.ne.s32.totalorder %s158, %s159
      %p171 = scmp.eq.s32.totalorder %s23, 1
      %p172 = por %p170, %p171
      %p174 = scmp.ne.s32.totalorder %s159, %s173
      %p175 = scmp.eq.s32.totalorder %s23, 0
      %p176 = por %p174, %p175
      %s178 = sadd.s32 %s177, 1
      %p181 = scmp.eq.s32.totalorder %s17, 1
      %p182 = scmp.ne.s32.totalorder %s177, %s179
      %p183 = scmp.eq.s32.totalorder %s17, 0
      %p184 = por %p182, %p183
      %p185 = scmp.ne.s32.totalorder %s177, %s179
      %p186 = scmp.eq.s32.totalorder %s22, 1
      %p187 = por %p185, %p186
      %p188 = scmp.ne.s32.totalorder %s179, %s180
      %p189 = scmp.eq.s32.totalorder %s22, 0
      %p190 = por %p188, %p189
      %p191 = scmp.ne.s32.totalorder %s179, %s180
      %p192 = scmp.eq.s32.totalorder %s23, 1
      %p193 = por %p191, %p192
      %p195 = scmp.ne.s32.totalorder %s180, %s194
      %p196 = scmp.eq.s32.totalorder %s23, 0
      %p197 = por %p195, %p196
      %s198 = ssub.s32 %s17, %s24
      %p199 = scmp.eq.s32.totalorder %s198, 0
      %s201 = sadd.s32 %s200, 1
      %s202 = scalar_select %p199, %s200, %s201
      %p205 = pneg %p199
      %p206 = scmp.eq.s32.totalorder %s17, 1
      %p207 = por %p205, %p206
      %p208 = scmp.ne.s32.totalorder %s200, %s203
      %p209 = scmp.eq.s32.totalorder %s17, 0
      %p210 = por %p208, %p209
      %p211 = scmp.ne.s32.totalorder %s200, %s203
      %p212 = scmp.eq.s32.totalorder %s22, 1
      %p213 = por %p211, %p212
      %p214 = scmp.ne.s32.totalorder %s203, %s204
      %p215 = scmp.eq.s32.totalorder %s22, 0
      %p216 = por %p214, %p215
      %p217 = scmp.ne.s32.totalorder %s203, %s204
      %p218 = scmp.eq.s32.totalorder %s23, 1
      %p219 = por %p217, %p218
      %p221 = scmp.ne.s32.totalorder %s204, %s220
      %p222 = scmp.eq.s32.totalorder %s23, 0
      %p223 = por %p221, %p222
      %p224 = scmp.le.s32.totalorder 1, %s17
      %p225 = scmp.lt.s32.totalorder %s17, 3
      %p226 = pnand %p224, %p225
      %p227 = pneg %p226
      // Predicated region
      $region9: #{tpu_custom_call.1} parent=5 // pred_check
        _
      $region10: #{tpu_custom_call.1} parent=5 // pred_check_branch
        %229 = sbr.rel (%p226) target = $region12
      $region11: #{tpu_custom_call.1} parent=5 // pred_region
        %s230 = ssub.s32 %s17, 1
        // Predicated region
        $region13: #{tpu_custom_call.1} parent=11 // pred_check
          %p231 = pneg %p64
        $region14: #{tpu_custom_call.1} parent=11 // pred_check_branch
          %233 = sbr.rel (%p231) target = $region16
        $region15: #{tpu_custom_call.1} parent=11 // pred_region
          _
        $region16: #{tpu_custom_call.1} parent=11 // pred_fallthru
          _
        // Predicated region
        $region17: #{tpu_custom_call.1} parent=11 // pred_check
          %p234 = pneg %p85
        $region18: #{tpu_custom_call.1} parent=11 // pred_check_branch
          %236 = sbr.rel (%p234) target = $region20
        $region19: #{tpu_custom_call.1} parent=11 // pred_region
          _
        $region20: #{tpu_custom_call.1} parent=11 // pred_fallthru
          _
        // Predicated region
        $region21: #{tpu_custom_call.1} parent=11 // pred_check
          %p237 = pneg %p106
        $region22: #{tpu_custom_call.1} parent=11 // pred_check_branch
          %239 = sbr.rel (%p237) target = $region24
        $region23: #{tpu_custom_call.1} parent=11 // pred_region
          _
        $region24: #{tpu_custom_call.1} parent=11 // pred_fallthru
          _
        // Predicated region
        $region25: #{tpu_custom_call.1} parent=11 // pred_check
          %p240 = pneg %p127
        $region26: #{tpu_custom_call.1} parent=11 // pred_check_branch
          %242 = sbr.rel (%p240) target = $region28
        $region27: #{tpu_custom_call.1} parent=11 // pred_region
          _
        $region28: #{tpu_custom_call.1} parent=11 // pred_fallthru
          _
        // Predicated region
        $region29: #{tpu_custom_call.1} parent=11 // pred_check
          %p243 = pneg %p148
        $region30: #{tpu_custom_call.1} parent=11 // pred_check_branch
          %245 = sbr.rel (%p243) target = $region32
        $region31: #{tpu_custom_call.1} parent=11 // pred_region
          _
        $region32: #{tpu_custom_call.1} parent=11 // pred_fallthru
          _
        // Predicated region
        $region33: #{tpu_custom_call.1} parent=11 // pred_check
          %p246 = pneg %p169
        $region34: #{tpu_custom_call.1} parent=11 // pred_check_branch
          %248 = sbr.rel (%p246) target = $region36
        $region35: #{tpu_custom_call.1} parent=11 // pred_region
          _
        $region36: #{tpu_custom_call.1} parent=11 // pred_fallthru
          _
        // Predicated region
        $region37: #{tpu_custom_call.1} parent=11 // pred_check
          %p249 = pneg %p190
        $region38: #{tpu_custom_call.1} parent=11 // pred_check_branch
          %251 = sbr.rel (%p249) target = $region40
        $region39: #{tpu_custom_call.1} parent=11 // pred_region
          _
        $region40: #{tpu_custom_call.1} parent=11 // pred_fallthru
          _
      $region12: #{tpu_custom_call.1} parent=5 // pred_fallthru
        _
      %p252 = scmp.lt.s32.totalorder %s17, 2
      // Predicated region
      $region41: #{tpu_custom_call.1} parent=5 // pred_check
        %p253 = pneg %p252
      $region42: #{tpu_custom_call.1} parent=5 // pred_check_branch
        %255 = sbr.rel (%p253) target = $region44
      $region43: #{tpu_custom_call.1} parent=5 // pred_region
        // Predicated region
        $region45: #{tpu_custom_call.1} parent=43 // pred_check
          %p256 = pneg %p37
        $region46: #{tpu_custom_call.1} parent=43 // pred_check_branch
          %258 = sbr.rel (%p256) target = $region48
        $region47: #{tpu_custom_call.1} parent=43 // pred_region
          %p259 = scmp.lt.s32.totalorder %s17, 1
          %s260 = scalar_select %p259, %s17, 1
          %s261 = smul.addr %s260, 2
          %s262 = smul.addr %s261, 2
          %s263 = scalar_lea.vmem %s0, %s262
        $region48: #{tpu_custom_call.1} parent=43 // pred_fallthru
          _
      $region44: #{tpu_custom_call.1} parent=5 // pred_fallthru
        _
      %p264 = scmp.le.s32.totalorder 1, %s17
      %p265 = scmp.lt.s32.totalorder %s17, 3
      %p266 = pnand %p264, %p265
      %p267 = pneg %p266
      // Predicated region
      $region49: #{tpu_custom_call.1} parent=5 // pred_check
        _
      $region50: #{tpu_custom_call.1} parent=5 // pred_check_branch
        %269 = sbr.rel (%p266) target = $region52
      $region51: #{tpu_custom_call.1} parent=5 // pred_region
        %s270 = ssub.s32 %s17, 1
        %p271 = scmp.lt.s32.totalorder %s22, 1
        %s272 = scalar_select %p271, %s22, 1
        %s273 = smul.addr %s272, 2
        %s274 = smul.addr %s273, 2
        %s275 = scalar_lea.vmem %s0, %s274
        %p276 = pneg %p43
        %p277 = pneg %p40
        %p278 = pneg %p64
        %p279 = pneg %p61
        %p280 = pneg %p85
        %p281 = pneg %p82
        %p282 = pneg %p106
        %p283 = pneg %p103
        %p284 = pneg %p127
        %p285 = pneg %p124
        %p286 = pneg %p148
        %p287 = pneg %p145
        %p288 = pneg %p169
        %p289 = pneg %p166
        %p290 = pneg %p190
        %p291 = pneg %p187
        %p292 = pneg %p216
        %p293 = pneg %p213
        %s294 = sand.u32 %s203, 1
        %s295 = scalar_lea.sflag [#allocation4], %s294
        %s296 = sand.u32 %s203, 1
        %s297 = smul.addr %s296, 8
        %s298 = scalar_lea.vmem [#allocation3], %s297
        %p299 = scmp.lt.s32.totalorder %s22, 1
        %s300 = scalar_select %p299, %s22, 1
        %s301 = smul.addr %s300, 2
        %s302 = smul.addr %s301, 2
        %s303 = scalar_lea.vmem %s0, %s302
        %v305 = vld [vmem:[%s1] sm:$0xf]
        %v306 = vld [vmem:[%s1 + $0x4] sm:$0xf]
        %v307 = vld [vmem:[%s2] sm:$0xff]
        %v308 = vld [vmem:[%s2 + $0x8] sm:$0xff]
        %v309 = vld [vmem:[%s3] sm:$0xff]
        %v310 = vld [vmem:[%s3 + $0x8] sm:$0xff]
        %v311 = vld [vmem:[%s4] sm:$0xff]
        %v312 = vld [vmem:[%s4 + $0x8] sm:$0xff]
        %v313 = vld [vmem:[%s5] sm:$0x3]
        %v314 = vld [vmem:[%s6] sm:$0xf]
        %v315 = vld [vmem:[%s7] sm:$0xf]
        %v316 = vld [vmem:[%s303] sm:$0xf]
        %318 = vset.pattern.permute.xlu0 0
        %319 = vperm.xlu0 %318, %v307
        %v320 = vpop.permute.xlu0 %319
        %323 = vset.pattern.permute.xlu0 0
        %324 = vperm.xlu0 %323, %v308
        %v325 = vpop.permute.xlu0 %324
        %v329 = vunpack.c.l.b16 %v305
        %v330 = vunpack.c.l.b16 %v306
        %v331 = vpack.c.b16 %v330, %v329
        %v334 = vunpack.c.l.s4 1983009808
        %v335 = vunpack.c.0.s8 %v334
        %v336 = vlaneseq
        %v337 = vshrl.u32 %v336, 7
        %v338 = vsub.s32 %v335, %v337
        %v339 = vrot.slane %v316, %v338
        %v340 = vcombine.high %v339, %v339
        %vm341 = vcmask 31744
        %v343 = vsel %vm341, %v331, 0
        %vm345 = vcmask 1041408
        %v347 = vsel %vm345, %v339, 0
        %v350 = vsel %vm345, %v340, 0
        %352 = vmatprep.subr.bf16.mxu0 %v350
        %353 = vmatpush1.bf16.msra.mxu0 %v347
        %354 = vmatprep.subr.bf16.mxu0 0
        %355 = vmatpush1.bf16.msra.mxu0 0
        %356 = vmatprep.subr.bf16.mxu0 0
        %357 = vmatpush1.bf16.msra.mxu0 0
        %358 = vmatprep.subr.bf16.mxu0 0
        %359 = vmatpush1.bf16.msra.mxu0 0
        %360 = vmatprep.subr.bf16.mxu0 0
        %361 = vmatpush1.bf16.msra.mxu0 0
        %362 = vmatprep.subr.bf16.mxu0 0
        %363 = vmatpush1.bf16.msra.mxu0 0
        %364 = vmatprep.subr.bf16.mxu0 0
        %365 = vmatpush1.bf16.msra.mxu0 0
        %366 = vmatprep.subr.bf16.mxu0 0
        %367 = vmatpush1.bf16.msra.mxu0 0
        %368 = vmatprep.subr.bf16.mxu0 0
        %369 = vmatpush1.bf16.msra.mxu0 0
        %370 = vmatprep.subr.bf16.mxu0 0
        %371 = vmatpush1.bf16.msra.mxu0 0
        %372 = vmatprep.subr.bf16.mxu0 0
        %373 = vmatpush1.bf16.msra.mxu0 0
        %374 = vmatprep.subr.bf16.mxu0 0
        %375 = vmatpush1.bf16.msra.mxu0 0
        %376 = vmatprep.subr.bf16.mxu0 0
        %377 = vmatpush1.bf16.msra.mxu0 0
        %378 = vmatprep.subr.bf16.mxu0 0
        %379 = vmatpush1.bf16.msra.mxu0 0
        %380 = vmatprep.subr.bf16.mxu0 0
        %381 = vmatpush1.bf16.msra.mxu0 0
        %382 = vmatprep.subr.bf16.mxu0 0
        %383 = vmatpush1.bf16.msra.mxu0 0
        %384 = vmatprep.mubr.bf16.mxu0 0
        %385 = vmatmul.mubr.bf16.gmra.mrb[0].mxu0 %v343
        %v386 = vpop.f32.mrb[0].mxu0
        %v387 = vadd.f32 %v320, %v386
        %v388 = vpop.f32.mrb[0].mxu0
        %v389 = vadd.f32 %v320, %v388
        %v390 = vpop.f32.mrb[0].mxu0
        %v391 = vadd.f32 %v325, %v390
        %v392 = vpop.f32.mrb[0].mxu0
        %v393 = vadd.f32 %v325, %v392
        %394 = vdwg.mxu0
        %v395 = vmax.f32 %v387, 0.0
        %v396 = vmax.f32 %v389, 0.0
        %v397 = vmax.f32 %v391, 0.0
        %v398 = vmax.f32 %v393, 0.0
        %v399 = vmin.f32 %v395, 6.0
        %v400 = vmin.f32 %v396, 6.0
        %v401 = vmin.f32 %v397, 6.0
        %v402 = vmin.f32 %v398, 6.0
        %v403 = vpack.c.bf16 %v401, %v399
        %v404 = vpack.c.bf16 %v402, %v400
        %vm405 = vcmask 138240
        %406 = vst.msk [vmem:[#allocation2] sm:$0xff] %vm405, 0
        %409 = vrot.lane.b32.xlu0 %v403, 17
        %v410 = vpop.permute.xlu0 %409
        %411 = vrot.lane.b32.xlu0 %v404, 17
        %v412 = vpop.permute.xlu0 %411
        %vm413 = vcmask 138240
        %v414 = vsel %vm413, %v410, %v412
        %vm418 = vcmask 1047688
        %419 = vst.msk [vmem:[#allocation2] sm:$0xff] %vm418, %v410
        %420 = vst [vmem:[#allocation2 + $0x8] sm:$0xff] %v414
        %421 = vst.msk [vmem:[#allocation2 + $0x10] sm:$0xff] %vm405, %v412
        %vm422 = vcmask 277640
        %423 = vst.msk [vmem:[#allocation2 + $0x10] sm:$0xff] %vm422, 0
        %v424 = vld [vmem:[#allocation2] sm:$0xff]
        %v425 = vld [vmem:[#allocation2 + $0x8] sm:$0xff]
        %v428 = vunpack.c.l.s4 1983009808
        %v429 = vunpack.c.0.s8 %v428
        %v430 = vlaneseq
        %v431 = vshrl.u32 %v430, 7
        %v432 = vsub.s32 %v429, %v431
        %v433 = vrot.slane %v315, %v432
        %v434 = vcombine.high %v433, %v433
        %v436 = vpack.i.b16 %v433, %v433
        %v438 = vlaneseq
        %v439 = vshrl.u32 %v438, 7
        %v440 = vsub.s32 0, %v439
        %v441 = vrot.slane %v436, %v440
        %v443 = vpack.i.b16 %v434, %v434
        %v445 = vlaneseq
        %v446 = vshrl.u32 %v445, 7
        %v447 = vsub.s32 0, %v446
        %v448 = vrot.slane %v443, %v447
        %v449 = vmul.bf16 %v424, %v441
        %v450 = vmul.bf16 %v425, %v448
        %v451 = vunpack.c.l.bf16 %v449
        %v452 = vunpack.c.l.bf16 %v450
        %v453 = vunpack.c.h.bf16 %v449
        %v454 = vunpack.c.h.bf16 %v450
        %456 = vset.pattern.permute.xlu0 0
        %457 = vperm.xlu0 %456, %v309
        %v458 = vpop.permute.xlu0 %457
        %461 = vset.pattern.permute.xlu0 0
        %462 = vperm.xlu0 %461, %v310
        %v463 = vpop.permute.xlu0 %462
        %v465 = vmul.f32 %v451, %v458
        %v466 = vmul.f32 %v452, %v458
        %v467 = vmul.f32 %v453, %v463
        %v468 = vmul.f32 %v454, %v463
        %v469 = vld [vmem:[#allocation2] sm:$0xff]
        %v470 = vld [vmem:[#allocation2 + $0x8] sm:$0xff]
        %v471 = vld [vmem:[#allocation2 + $0x10] sm:$0xff]
        %v472 = vunpack.c.l.bf16 %v469
        %v473 = vunpack.c.l.bf16 %v470
        %v474 = vunpack.c.l.bf16 %v471
        %v475 = vunpack.c.h.bf16 %v469
        %v476 = vunpack.c.h.bf16 %v470
        %v477 = vunpack.c.h.bf16 %v471
        %478 = vset.pattern.permute.xlu0 1
        %479 = vperm.xlu0 %478, %v309
        %v480 = vpop.permute.xlu0 %479
        %482 = vset.pattern.permute.xlu0 1
        %483 = vperm.xlu0 %482, %v310
        %v484 = vpop.permute.xlu0 %483
        %v486 = vmul.f32 %v472, %v480
        %v487 = vmul.f32 %v473, %v480
        %v488 = vmul.f32 %v474, %v480
        %v489 = vmul.f32 %v475, %v484
        %v490 = vmul.f32 %v476, %v484
        %v491 = vmul.f32 %v477, %v484
        %498 = vrot.lane.b32.xlu0 %v486, 127
        %v499 = vpop.permute.xlu0 %498
        %500 = vrot.lane.b32.xlu0 %v487, 127
        %v501 = vpop.permute.xlu0 %500
        %502 = vrot.lane.b32.xlu0 %v488, 127
        %v503 = vpop.permute.xlu0 %502
        %504 = vrot.lane.b32.xlu0 %v489, 127
        %v505 = vpop.permute.xlu0 %504
        %506 = vrot.lane.b32.xlu0 %v490, 127
        %v507 = vpop.permute.xlu0 %506
        %508 = vrot.lane.b32.xlu0 %v491, 127
        %v509 = vpop.permute.xlu0 %508
        %vm510 = vcmask 1039360
        %v511 = vsel %vm510, %v499, %v501
        %v512 = vsel %vm510, %v501, %v503
        %v513 = vsel %vm510, %v505, %v507
        %v514 = vsel %vm510, %v507, %v509
        %v519 = vadd.f32 %v465, %v511
        %v520 = vadd.f32 %v466, %v512
        %v521 = vadd.f32 %v467, %v513
        %v522 = vadd.f32 %v468, %v514
        %v523 = vlaneseq
        %v524 = vshrl.u32 %v523, 7
        %v525 = vsub.s32 1, %v524
        %v526 = vrot.slane %v436, %v525
        %v527 = vlaneseq
        %v528 = vshrl.u32 %v527, 7
        %v529 = vsub.s32 1, %v528
        %v530 = vrot.slane %v443, %v529
        %533 = vrot.lane.b32.xlu0 %v526, 2
        %v534 = vpop.permute.xlu0 %533
        %535 = vrot.lane.b32.xlu0 %v530, 2
        %v536 = vpop.permute.xlu0 %535
        %vm537 = vcmask 15360
        %v538 = vsel %vm537, %v534, %v536
        %v542 = vmul.bf16 %v469, %v534
        %v543 = vmul.bf16 %v470, %v538
        %v544 = vmul.bf16 %v471, %v536
        %v545 = vunpack.c.l.bf16 %v542
        %v546 = vunpack.c.l.bf16 %v543
        %v547 = vunpack.c.l.bf16 %v544
        %v548 = vunpack.c.h.bf16 %v542
        %v549 = vunpack.c.h.bf16 %v543
        %v550 = vunpack.c.h.bf16 %v544
        %551 = vset.pattern.permute.xlu0 2
        %552 = vperm.xlu0 %551, %v309
        %v553 = vpop.permute.xlu0 %552
        %555 = vset.pattern.permute.xlu0 2
        %556 = vperm.xlu0 %555, %v310
        %v557 = vpop.permute.xlu0 %556
        %v559 = vmul.f32 %v545, %v553
        %v560 = vmul.f32 %v546, %v553
        %v561 = vmul.f32 %v547, %v553
        %v562 = vmul.f32 %v548, %v557
        %v563 = vmul.f32 %v549, %v557
        %v564 = vmul.f32 %v550, %v557
        %571 = vrot.lane.b32.xlu0 %v559, 126
        %v572 = vpop.permute.xlu0 %571
        %573 = vrot.lane.b32.xlu0 %v560, 126
        %v574 = vpop.permute.xlu0 %573
        %575 = vrot.lane.b32.xlu0 %v561, 126
        %v576 = vpop.permute.xlu0 %575
        %577 = vrot.lane.b32.xlu0 %v562, 126
        %v578 = vpop.permute.xlu0 %577
        %579 = vrot.lane.b32.xlu0 %v563, 126
        %v580 = vpop.permute.xlu0 %579
        %581 = vrot.lane.b32.xlu0 %v564, 126
        %v582 = vpop.permute.xlu0 %581
        %vm583 = vcmask 1031168
        %v584 = vsel %vm583, %v572, %v574
        %v585 = vsel %vm583, %v574, %v576
        %v586 = vsel %vm583, %v578, %v580
        %v587 = vsel %vm583, %v580, %v582
        %v592 = vadd.f32 %v519, %v584
        %v593 = vadd.f32 %v520, %v585
        %v594 = vadd.f32 %v521, %v586
        %v595 = vadd.f32 %v522, %v587
        %v596 = vld [vmem:[#allocation2] sm:$0xff]
        %v597 = vld [vmem:[#allocation2 + $0x8] sm:$0xff]
        %v598 = vld [vmem:[#allocation2 + $0x10] sm:$0xff]
        %601 = vrot.lane.b32.xlu0 %v441, 16
        %v602 = vpop.permute.xlu0 %601
        %603 = vrot.lane.b32.xlu0 %v448, 16
        %v604 = vpop.permute.xlu0 %603
        %vm605 = vcmask 130048
        %v606 = vsel %vm605, %v602, %v604
        %v610 = vmul.bf16 %v596, %v602
        %v611 = vmul.bf16 %v597, %v606
        %v612 = vmul.bf16 %v598, %v604
        %v613 = vunpack.c.l.bf16 %v610
        %v614 = vunpack.c.l.bf16 %v611
        %v615 = vunpack.c.l.bf16 %v612
        %v616 = vunpack.c.h.bf16 %v610
        %v617 = vunpack.c.h.bf16 %v611
        %v618 = vunpack.c.h.bf16 %v612
        %619 = vset.pattern.permute.xlu0 3
        %620 = vperm.xlu0 %619, %v309
        %v621 = vpop.permute.xlu0 %620
        %623 = vset.pattern.permute.xlu0 3
        %624 = vperm.xlu0 %623, %v310
        %v625 = vpop.permute.xlu0 %624
        %v627 = vmul.f32 %v613, %v621
        %v628 = vmul.f32 %v614, %v621
        %v629 = vmul.f32 %v615, %v621
        %v630 = vmul.f32 %v616, %v625
        %v631 = vmul.f32 %v617, %v625
        %v632 = vmul.f32 %v618, %v625
        %639 = vrot.lane.b32.xlu0 %v627, 112
        %v640 = vpop.permute.xlu0 %639
        %641 = vrot.lane.b32.xlu0 %v628, 112
        %v642 = vpop.permute.xlu0 %641
        %643 = vrot.lane.b32.xlu0 %v629, 112
        %v644 = vpop.permute.xlu0 %643
        %645 = vrot.lane.b32.xlu0 %v630, 112
        %v646 = vpop.permute.xlu0 %645
        %647 = vrot.lane.b32.xlu0 %v631, 112
        %v648 = vpop.permute.xlu0 %647
        %649 = vrot.lane.b32.xlu0 %v632, 112
        %v650 = vpop.permute.xlu0 %649
        %vm651 = vcmask 916480
        %v652 = vsel %vm651, %v640, %v642
        %v653 = vsel %vm651, %v642, %v644
        %v654 = vsel %vm651, %v646, %v648
        %v655 = vsel %vm651, %v648, %v650
        %v660 = vadd.f32 %v592, %v652
        %v661 = vadd.f32 %v593, %v653
        %v662 = vadd.f32 %v594, %v654
        %v663 = vadd.f32 %v595, %v655
        %v664 = vunpack.c.l.bf16 %v596
        %v665 = vunpack.c.l.bf16 %v597
        %v666 = vunpack.c.l.bf16 %v598
        %v667 = vunpack.c.h.bf16 %v596
        %v668 = vunpack.c.h.bf16 %v597
        %v669 = vunpack.c.h.bf16 %v598
        %670 = vset.pattern.permute.xlu0 4
        %671 = vperm.xlu0 %670, %v309
        %v672 = vpop.permute.xlu0 %671
        %674 = vset.pattern.permute.xlu0 4
        %675 = vperm.xlu0 %674, %v310
        %v676 = vpop.permute.xlu0 %675
        %v678 = vmul.f32 %v664, %v672
        %v679 = vmul.f32 %v665, %v672
        %v680 = vmul.f32 %v666, %v672
        %v681 = vmul.f32 %v667, %v676
        %v682 = vmul.f32 %v668, %v676
        %v683 = vmul.f32 %v669, %v676
        %690 = vrot.lane.b32.xlu0 %v678, 111
        %v691 = vpop.permute.xlu0 %690
        %692 = vrot.lane.b32.xlu0 %v679, 111
        %v693 = vpop.permute.xlu0 %692
        %694 = vrot.lane.b32.xlu0 %v680, 111
        %v695 = vpop.permute.xlu0 %694
        %696 = vrot.lane.b32.xlu0 %v681, 111
        %v697 = vpop.permute.xlu0 %696
        %698 = vrot.lane.b32.xlu0 %v682, 111
        %v699 = vpop.permute.xlu0 %698
        %700 = vrot.lane.b32.xlu0 %v683, 111
        %v701 = vpop.permute.xlu0 %700
        %vm702 = vcmask 908288
        %v703 = vsel %vm702, %v691, %v693
        %v704 = vsel %vm702, %v693, %v695
        %v705 = vsel %vm702, %v697, %v699
        %v706 = vsel %vm702, %v699, %v701
        %v711 = vadd.f32 %v660, %v703
        %v712 = vadd.f32 %v661, %v704
        %v713 = vadd.f32 %v662, %v705
        %v714 = vadd.f32 %v663, %v706
        %715 = vrot.lane.b32.xlu0 %v526, 18
        %v716 = vpop.permute.xlu0 %715
        %717 = vrot.lane.b32.xlu0 %v530, 18
        %v718 = vpop.permute.xlu0 %717
        %vm719 = vcmask 146432
        %v720 = vsel %vm719, %v716, %v718
        %v724 = vmul.bf16 %v596, %v716
        %v725 = vmul.bf16 %v597, %v720
        %v726 = vmul.bf16 %v598, %v718
        %v727 = vunpack.c.l.bf16 %v724
        %v728 = vunpack.c.l.bf16 %v725
        %v729 = vunpack.c.l.bf16 %v726
        %v730 = vunpack.c.h.bf16 %v724
        %v731 = vunpack.c.h.bf16 %v725
        %v732 = vunpack.c.h.bf16 %v726
        %733 = vset.pattern.permute.xlu0 5
        %734 = vperm.xlu0 %733, %v309
        %v735 = vpop.permute.xlu0 %734
        %737 = vset.pattern.permute.xlu0 5
        %738 = vperm.xlu0 %737, %v310
        %v739 = vpop.permute.xlu0 %738
        %v741 = vmul.f32 %v727, %v735
        %v742 = vmul.f32 %v728, %v735
        %v743 = vmul.f32 %v729, %v735
        %v744 = vmul.f32 %v730, %v739
        %v745 = vmul.f32 %v731, %v739
        %v746 = vmul.f32 %v732, %v739
        %753 = vrot.lane.b32.xlu0 %v741, 110
        %v754 = vpop.permute.xlu0 %753
        %755 = vrot.lane.b32.xlu0 %v742, 110
        %v756 = vpop.permute.xlu0 %755
        %757 = vrot.lane.b32.xlu0 %v743, 110
        %v758 = vpop.permute.xlu0 %757
        %759 = vrot.lane.b32.xlu0 %v744, 110
        %v760 = vpop.permute.xlu0 %759
        %761 = vrot.lane.b32.xlu0 %v745, 110
        %v762 = vpop.permute.xlu0 %761
        %763 = vrot.lane.b32.xlu0 %v746, 110
        %v764 = vpop.permute.xlu0 %763
        %vm765 = vcmask 900096
        %v766 = vsel %vm765, %v754, %v756
        %v767 = vsel %vm765, %v756, %v758
        %v768 = vsel %vm765, %v760, %v762
        %v769 = vsel %vm765, %v762, %v764
        %v774 = vadd.f32 %v711, %v766
        %v775 = vadd.f32 %v712, %v767
        %v776 = vadd.f32 %v713, %v768
        %v777 = vadd.f32 %v714, %v769
        %778 = vrot.lane.b32.xlu0 %v441, 32
        %v779 = vpop.permute.xlu0 %778
        %780 = vrot.lane.b32.xlu0 %v448, 32
        %v781 = vpop.permute.xlu0 %780
        %vm782 = vcmask 261120
        %v783 = vsel %vm782, %v779, %v781
        %v787 = vmul.bf16 %v596, %v779
        %v788 = vmul.bf16 %v597, %v783
        %v789 = vmul.bf16 %v598, %v781
        %v790 = vunpack.c.l.bf16 %v787
        %v791 = vunpack.c.l.bf16 %v788
        %v792 = vunpack.c.l.bf16 %v789
        %v793 = vunpack.c.h.bf16 %v787
        %v794 = vunpack.c.h.bf16 %v788
        %v795 = vunpack.c.h.bf16 %v789
        %796 = vset.pattern.permute.xlu0 6
        %797 = vperm.xlu0 %796, %v309
        %v798 = vpop.permute.xlu0 %797
        %800 = vset.pattern.permute.xlu0 6
        %801 = vperm.xlu0 %800, %v310
        %v802 = vpop.permute.xlu0 %801
        %v804 = vmul.f32 %v790, %v798
        %v805 = vmul.f32 %v791, %v798
        %v806 = vmul.f32 %v792, %v798
        %v807 = vmul.f32 %v793, %v802
        %v808 = vmul.f32 %v794, %v802
        %v809 = vmul.f32 %v795, %v802
        %816 = vrot.lane.b32.xlu0 %v804, 96
        %v817 = vpop.permute.xlu0 %816
        %818 = vrot.lane.b32.xlu0 %v805, 96
        %v819 = vpop.permute.xlu0 %818
        %820 = vrot.lane.b32.xlu0 %v806, 96
        %v821 = vpop.permute.xlu0 %820
        %822 = vrot.lane.b32.xlu0 %v807, 96
        %v823 = vpop.permute.xlu0 %822
        %824 = vrot.lane.b32.xlu0 %v808, 96
        %v825 = vpop.permute.xlu0 %824
        %826 = vrot.lane.b32.xlu0 %v809, 96
        %v827 = vpop.permute.xlu0 %826
        %vm828 = vcmask 785408
        %v829 = vsel %vm828, %v817, %v819
        %v830 = vsel %vm828, %v819, %v821
        %v831 = vsel %vm828, %v823, %v825
        %v832 = vsel %vm828, %v825, %v827
        %v837 = vadd.f32 %v774, %v829
        %v838 = vadd.f32 %v775, %v830
        %v839 = vadd.f32 %v776, %v831
        %v840 = vadd.f32 %v777, %v832
        %841 = vset.pattern.permute.xlu0 7
        %842 = vperm.xlu0 %841, %v309
        %v843 = vpop.permute.xlu0 %842
        %845 = vset.pattern.permute.xlu0 7
        %846 = vperm.xlu0 %845, %v310
        %v847 = vpop.permute.xlu0 %846
        %v849 = vmul.f32 %v664, %v843
        %v850 = vmul.f32 %v665, %v843
        %v851 = vmul.f32 %v666, %v843
        %v852 = vmul.f32 %v667, %v847
        %v853 = vmul.f32 %v668, %v847
        %v854 = vmul.f32 %v669, %v847
        %861 = vrot.lane.b32.xlu0 %v849, 95
        %v862 = vpop.permute.xlu0 %861
        %863 = vrot.lane.b32.xlu0 %v850, 95
        %v864 = vpop.permute.xlu0 %863
        %865 = vrot.lane.b32.xlu0 %v851, 95
        %v866 = vpop.permute.xlu0 %865
        %867 = vrot.lane.b32.xlu0 %v852, 95
        %v868 = vpop.permute.xlu0 %867
        %869 = vrot.lane.b32.xlu0 %v853, 95
        %v870 = vpop.permute.xlu0 %869
        %871 = vrot.lane.b32.xlu0 %v854, 95
        %v872 = vpop.permute.xlu0 %871
        %vm873 = vcmask 777216
        %v874 = vsel %vm873, %v862, %v864
        %v875 = vsel %vm873, %v864, %v866
        %v876 = vsel %vm873, %v868, %v870
        %v877 = vsel %vm873, %v870, %v872
        %v882 = vadd.f32 %v837, %v874
        %v883 = vadd.f32 %v838, %v875
        %v884 = vadd.f32 %v839, %v876
        %v885 = vadd.f32 %v840, %v877
        %886 = vrot.lane.b32.xlu0 %v526, 34
        %v887 = vpop.permute.xlu0 %886
        %888 = vrot.lane.b32.xlu0 %v530, 34
        %v889 = vpop.permute.xlu0 %888
        %vm890 = vcmask 277504
        %v891 = vsel %vm890, %v887, %v889
        %v895 = vmul.bf16 %v596, %v887
        %v896 = vmul.bf16 %v597, %v891
        %v897 = vmul.bf16 %v598, %v889
        %v898 = vunpack.c.l.bf16 %v895
        %v899 = vunpack.c.l.bf16 %v896
        %v900 = vunpack.c.l.bf16 %v897
        %v901 = vunpack.c.h.bf16 %v895
        %v902 = vunpack.c.h.bf16 %v896
        %v903 = vunpack.c.h.bf16 %v897
        %904 = vset.pattern.permute.xlu0 8
        %905 = vperm.xlu0 %904, %v309
        %v906 = vpop.permute.xlu0 %905
        %908 = vset.pattern.permute.xlu0 8
        %909 = vperm.xlu0 %908, %v310
        %v910 = vpop.permute.xlu0 %909
        %v912 = vmul.f32 %v898, %v906
        %v913 = vmul.f32 %v899, %v906
        %v914 = vmul.f32 %v900, %v906
        %v915 = vmul.f32 %v901, %v910
        %v916 = vmul.f32 %v902, %v910
        %v917 = vmul.f32 %v903, %v910
        %924 = vrot.lane.b32.xlu0 %v912, 94
        %v925 = vpop.permute.xlu0 %924
        %926 = vrot.lane.b32.xlu0 %v913, 94
        %v927 = vpop.permute.xlu0 %926
        %928 = vrot.lane.b32.xlu0 %v914, 94
        %v929 = vpop.permute.xlu0 %928
        %930 = vrot.lane.b32.xlu0 %v915, 94
        %v931 = vpop.permute.xlu0 %930
        %932 = vrot.lane.b32.xlu0 %v916, 94
        %v933 = vpop.permute.xlu0 %932
        %934 = vrot.lane.b32.xlu0 %v917, 94
        %v935 = vpop.permute.xlu0 %934
        %vm936 = vcmask 769024
        %v937 = vsel %vm936, %v925, %v927
        %v938 = vsel %vm936, %v927, %v929
        %v939 = vsel %vm936, %v931, %v933
        %v940 = vsel %vm936, %v933, %v935
        %v945 = vadd.f32 %v882, %v937
        %v946 = vadd.f32 %v883, %v938
        %v947 = vadd.f32 %v884, %v939
        %v948 = vadd.f32 %v885, %v940
        %950 = vset.pattern.permute.xlu0 0
        %951 = vperm.xlu0 %950, %v311
        %v952 = vpop.permute.xlu0 %951
        %955 = vset.pattern.permute.xlu0 0
        %956 = vperm.xlu0 %955, %v312
        %v957 = vpop.permute.xlu0 %956
        %v959 = vadd.f32 %v945, %v952
        %v960 = vadd.f32 %v946, %v952
        %v961 = vadd.f32 %v947, %v957
        %v962 = vadd.f32 %v948, %v957
        %v963 = vmax.f32 %v959, 0.0
        %v964 = vmax.f32 %v960, 0.0
        %v965 = vmax.f32 %v961, 0.0
        %v966 = vmax.f32 %v962, 0.0
        %v967 = vmin.f32 %v963, 6.0
        %v968 = vmin.f32 %v964, 6.0
        %v969 = vmin.f32 %v965, 6.0
        %v970 = vmin.f32 %v966, 6.0
        %v971 = vpack.c.bf16 %v969, %v967
        %v972 = vpack.c.bf16 %v970, %v968
        %974 = vset.pattern.permute.xlu0 0
        %975 = vperm.xlu0 %974, %v314
        %v976 = vpop.permute.xlu0 %975
        %vm978 = vcmask 130048
        %v980 = vsel %vm978, %v313, 0
        %982 = vmatprep.subr.bf16.mxu0 %v972
        %983 = vmatpush1.bf16.msra.mxu0 %v971
        %984 = vmatprep.subr.bf16.mxu0 0
        %985 = vmatpush1.bf16.msra.mxu0 0
        %986 = vmatprep.subr.bf16.mxu0 0
        %987 = vmatpush1.bf16.msra.mxu0 0
        %988 = vmatprep.subr.bf16.mxu0 0
        %989 = vmatpush1.bf16.msra.mxu0 0
        %990 = vmatprep.subr.bf16.mxu0 0
        %991 = vmatpush1.bf16.msra.mxu0 0
        %992 = vmatprep.subr.bf16.mxu0 0
        %993 = vmatpush1.bf16.msra.mxu0 0
        %994 = vmatprep.subr.bf16.mxu0 0
        %995 = vmatpush1.bf16.msra.mxu0 0
        %996 = vmatprep.subr.bf16.mxu0 0
        %997 = vmatpush1.bf16.msra.mxu0 0
        %998 = vmatprep.subr.bf16.mxu0 0
        %999 = vmatpush1.bf16.msra.mxu0 0
        %1000 = vmatprep.subr.bf16.mxu0 0
        %1001 = vmatpush1.bf16.msra.mxu0 0
        %1002 = vmatprep.subr.bf16.mxu0 0
        %1003 = vmatpush1.bf16.msra.mxu0 0
        %1004 = vmatprep.subr.bf16.mxu0 0
        %1005 = vmatpush1.bf16.msra.mxu0 0
        %1006 = vmatprep.subr.bf16.mxu0 0
        %1007 = vmatpush1.bf16.msra.mxu0 0
        %1008 = vmatprep.subr.bf16.mxu0 0
        %1009 = vmatpush1.bf16.msra.mxu0 0
        %1010 = vmatprep.subr.bf16.mxu0 0
        %1011 = vmatpush1.bf16.msra.mxu0 0
        %1012 = vmatprep.subr.bf16.mxu0 0
        %1013 = vmatpush1.bf16.msra.mxu0 0
        %1014 = vmatprep.mubr.bf16.mxu0 0
        %1015 = vmatmul.mubr.bf16.gmra.mrb[0].mxu0 %v980
        %v1016 = vpop.f32.mrb[0].mxu0
        %v1017 = vadd.f32 %v976, %v1016
        %v1018 = vpop.f32.mrb[0].mxu0
        %v1019 = vadd.f32 %v976, %v1018
        %v1020 = vpop.f32.mrb[0].mxu0
        %v1021 = vpop.f32.mrb[0].mxu0
        %1022 = vdwg.mxu0
        %v1023 = vld [vmem:[%s303] sm:$0xf]
        %v1024 = vunpack.c.l.bf16 %v1023
        %v1026 = vcombine.high %v1024, %v1024
        %v1028 = vadd.f32 %v1017, %v1024
        %v1029 = vadd.f32 %v1019, %v1026
        %v1032 = vcombine.low %v1028, %v1029
        %1034 = vst [vmem:[%s298] sm:$0xff] %v1032
        %s1035 = sand.u32 %s203, 1
        %s1036 = scalar_lea.sflag [#allocation4], %s1035
        %s1037 = sand.u32 %s203, 1
        %s1038 = smul.addr %s1037, 8
        %s1039 = scalar_lea.vmem [#allocation3], %s1038
        // Predicated region
        $region53: #{tpu_custom_call.1} parent=51 // pred_check
          %p1040 = pneg %p213
        $region54: #{tpu_custom_call.1} parent=51 // pred_check_branch
          %1042 = sbr.rel (%p1040) target = $region56
        $region55: #{tpu_custom_call.1} parent=51 // pred_region
          %s1044 = ssub.s32 128, 128
          %1045 = vsyncadd %s1036, %s1044
          %s1046 = smul.addr %s22, 2
          %s1047 = smul.addr %s1046, 64
          %s1048 = scalar_lea.hbm %s8, %s1047
          %s1050 = sshll.u32 %s1039, 4
          %s1051 = int_to_ptr.vmem [resolvable:$true] %s1050
          %1053 = dma.vmem_to_hbm [thread:$0]  %s1051, 128, %s1048, %s1036
        $region56: #{tpu_custom_call.1} parent=51 // pred_fallthru
          _
      $region52: #{tpu_custom_call.1} parent=5 // pred_fallthru
        _
      %p1054 = scmp.le.s32.totalorder 2, %s17
      // Predicated region
      $region57: #{tpu_custom_call.1} parent=5 // pred_check
        %p1055 = pneg %p1054
      $region58: #{tpu_custom_call.1} parent=5 // pred_check_branch
        %1057 = sbr.rel (%p1055) target = $region60
      $region59: #{tpu_custom_call.1} parent=5 // pred_region
        %s1058 = ssub.s32 %s17, 2
        // Predicated region
        $region61: #{tpu_custom_call.1} parent=59 // pred_check
          %p1059 = pneg %p219
        $region62: #{tpu_custom_call.1} parent=59 // pred_check_branch
          %1061 = sbr.rel (%p1059) target = $region64
        $region63: #{tpu_custom_call.1} parent=59 // pred_region
          %s1062 = sand.u32 %s204, 1
          %s1063 = scalar_lea.sflag [#allocation4], %s1062
          %s1064 = sand.u32 %s204, 1
          %s1065 = smul.addr %s1064, 8
          %s1066 = scalar_lea.vmem [#allocation3], %s1065
          %1067 = dma.done %s1063, 128
        $region64: #{tpu_custom_call.1} parent=59 // pred_fallthru
          _
      $region60: #{tpu_custom_call.1} parent=5 // pred_fallthru
        _
    $region6: #{tpu_custom_call.1} parent=1 // loop_footer
      %s21 = sadd.s32 1, %s17
    $region7: #{tpu_custom_call.1} parent=1 // loop_footer_branch
      %16 = sbr.rel target = $region3
    $region8: #{tpu_custom_call.1} parent=1 // loop_exit
      _
    %1068 = vsyncpa [#allocation4], 1
    %s1069 = scalar_lea.sflag [#allocation4], 1
    %1070 = vsyncpa %s1069, 1

</llo_original>
